<compile_context>
chip_gen: v6e
topology: v6e:2x2x1
jax: 0.10.0
libtpu: 0.0.40
codegen_flags: <defaults>
</compile_context>

<pallas_src>
import functools

import jax
import jax.numpy as jnp
from jax import lax
from jax.experimental import pallas as pl
from jax.experimental.pallas import tpu as pltpu

_LANE = 128
# Anything at/below this goes through the single-shot (no-grid) path.
_SMALL_BYTES = 4 * 1024 * 1024
# Target bytes per x block for the gridded (large-x) path.
_BLOCK_BYTES = 1 * 1024 * 1024


def _loss_kernel_small(x_ref, w_ref, b_ref, o_ref, *, inv_w, inv_b):
    """Single shot: x.sum() + weight.mean() + bias.mean() -> (1,1) SMEM."""
    x_sum = jnp.sum(x_ref[...].astype(jnp.float32))
    # Tiny (220-element) parameter reduces ride in VPU/XLU slack behind the
    # x reduce; the 1/N scales are folded at trace time.
    w_mean = jnp.sum(w_ref[...].astype(jnp.float32)) * inv_w
    b_mean = jnp.sum(b_ref[...].astype(jnp.float32)) * inv_b
    o_ref[0, 0] = x_sum + w_mean + b_mean


def _loss_kernel_grid(x_ref, w_ref, b_ref, o_ref, *, n_rows, inv_w, inv_b):
    """Row-tiled reduction; the (1,1) output block stays resident across grid."""
    i = pl.program_id(0)

    @pl.when(i == 0)
    def _():
        o_ref[...] = jnp.zeros_like(o_ref)

    # Mask rows past the true extent (only the last block can be ragged);
    # n_rows is a trace-time constant, so the compare/select is cheap VPU work.
    tr = x_ref.shape[0]
    row = i * tr + lax.broadcasted_iota(jnp.int32, x_ref.shape, 0)
    xv = jnp.where(row < n_rows, x_ref[...].astype(jnp.float32), 0.0)
    o_ref[...] += jnp.sum(xv, keepdims=True)

    @pl.when(i == pl.num_programs(0) - 1)
    def _():
        w_mean = jnp.sum(w_ref[...].astype(jnp.float32)) * inv_w
        b_mean = jnp.sum(b_ref[...].astype(jnp.float32)) * inv_b
        o_ref[...] += w_mean + b_mean


def simple_model_loss(x, weight, bias):
    """Pallas implementation of _SimpleModel.forward; returns {'loss': scalar}."""
    n = x.size
    nbytes = n * jnp.dtype(x.dtype).itemsize
    b2d = bias.reshape(1, -1)                       # free bitcast
    inv_w = 1.0 / float(weight.size)
    inv_b = 1.0 / float(bias.size)

    if nbytes <= _SMALL_BYTES:
        # Lane-dense 2D view of x (pure reshape of contiguous data: no copy,
        # no padding, no dtype cast).
        x2d = x.reshape(-1, _LANE) if n % _LANE == 0 else x.reshape(1, -1)
        kernel = functools.partial(_loss_kernel_small, inv_w=inv_w, inv_b=inv_b)
        out = pl.pallas_call(
            kernel,
            out_shape=jax.ShapeDtypeStruct((1, 1), jnp.float32),
            in_specs=[
                pl.BlockSpec(memory_space=pltpu.VMEM),   # x slab
                pl.BlockSpec(memory_space=pltpu.VMEM),   # weight (20,10)
                pl.BlockSpec(memory_space=pltpu.VMEM),   # bias   (1,20)
            ],
            out_specs=pl.BlockSpec(memory_space=pltpu.SMEM),
        )(x2d, weight, b2d)
        return {"loss": out[0, 0]}

    # ---- Large-x path: 1-D row-tiled grid over a 2D view of x. ----
    if n % _LANE == 0:
        x2d = x.reshape(-1, _LANE)                  # lane-dense, free bitcast
    else:
        # Natural leading axis; trailing extent stays full so every element in
        # a row is real data (only trailing *rows* of the last block need masking).
        x2d = x.reshape(x.shape[0], -1)
    rows, cols = x2d.shape
    row_bytes = cols * jnp.dtype(x2d.dtype).itemsize
    tr = max(1, _BLOCK_BYTES // row_bytes)
    if tr >= rows:
        tr = rows
    else:
        tr = max(8, (tr // 8) * 8)                  # sublane-divisible tiles
    grid = (pl.cdiv(rows, tr),)

    kernel = functools.partial(
        _loss_kernel_grid, n_rows=rows, inv_w=inv_w, inv_b=inv_b)
    out = pl.pallas_call(
        kernel,
        out_shape=jax.ShapeDtypeStruct((1, 1), jnp.float32),
        grid=grid,
        in_specs=[
            pl.BlockSpec((tr, cols), lambda i: (i, 0)),
            pl.BlockSpec(weight.shape, lambda i: (0, 0)),
            pl.BlockSpec(b2d.shape, lambda i: (0, 0)),
        ],
        out_specs=pl.BlockSpec((1, 1), lambda i: (0, 0)),
        compiler_params=pltpu.CompilerParams(dimension_semantics=("arbitrary",)),
    )(x2d, weight, b2d)
    # TODO(synk): on v7x a leading "parallel" axis with per-core (2,1) partial
    # sums would also use the second TensorCore's HBM bandwidth for huge x.
    return {"loss": out[0, 0]}


if __name__ == "__main__":
    key = jax.random.PRNGKey(0)
    kx, kw, kb, kx2 = jax.random.split(key, 4)

    # Parameters of nn.Linear(10, 20): weight (20,10), bias (20,)
    weight = jax.random.normal(kw, (20, 10), dtype=jnp.float32) * 0.1
    bias = jax.random.normal(kb, (20,), dtype=jnp.float32) * 0.1

    # 1) Module-sized input (batch=2, channels=4, 16x16): single-shot path.
    x = jax.random.normal(kx, (2, 4, 16, 16), dtype=jnp.float32)
    loss = jax.block_until_ready(simple_model_loss(x, weight, bias)["loss"])
    ref = jnp.sum(x) + jnp.mean(weight) + jnp.mean(bias)
    assert jnp.allclose(loss, ref, rtol=1e-5, atol=1e-5), (loss, ref)

    # 2) Larger input to exercise the gridded (large-x) reduction path.
    x_big = jax.random.uniform(kx2, (8, 4, 256, 256), dtype=jnp.float32)
    loss_big = jax.block_until_ready(simple_model_loss(x_big, weight, bias)["loss"])
    ref_big = jnp.sum(x_big) + jnp.mean(weight) + jnp.mean(bias)
    assert jnp.allclose(loss_big, ref_big, rtol=1e-4, atol=1e-2), (loss_big, ref_big)

    print("KERNEL_OK")
</pallas_src>

<mosaic_0001>
module attributes {stable_mosaic.version = 11 : i64} {
  func.func @_loss_kernel_small(%arg0: memref<16x128xf32, #tpu.memory_space<vmem>>, %arg1: memref<20x10xf32, #tpu.memory_space<vmem>>, %arg2: memref<1x20xf32, #tpu.memory_space<vmem>>, %arg3: memref<1x1xf32, #tpu.memory_space<smem>>) attributes {dimension_semantics = [], scalar_prefetch = 0 : i64, scratch_operands = 0 : i64, tpu.core_type = #tpu.core_type<tc>} {
    %c0 = arith.constant 0 : index
    %c0_0 = arith.constant 0 : index
    %0 = vector.load %arg0[%c0, %c0_0] : memref<16x128xf32, #tpu.memory_space<vmem>>, vector<16x128xf32>
    %1 = vector.shape_cast %0 : vector<16x128xf32> to vector<1x16x128xf32>
    %cst = arith.constant dense<0.000000e+00> : vector<1xf32>
    %2 = vector.multi_reduction <add>, %1, %cst [1, 2] : vector<1x16x128xf32> to vector<1xf32>
    %3 = vector.shape_cast %2 : vector<1xf32> to vector<1x1x1xf32>
    %4 = vector.extract %3[0, 0, 0] : f32 from vector<1x1x1xf32>
    %c0_1 = arith.constant 0 : index
    %c0_2 = arith.constant 0 : index
    %5 = vector.load %arg1[%c0_1, %c0_2] : memref<20x10xf32, #tpu.memory_space<vmem>>, vector<20x10xf32>
    %6 = vector.shape_cast %5 : vector<20x10xf32> to vector<1x20x10xf32>
    %cst_3 = arith.constant dense<0.000000e+00> : vector<1xf32>
    %7 = vector.multi_reduction <add>, %6, %cst_3 [1, 2] : vector<1x20x10xf32> to vector<1xf32>
    %8 = vector.shape_cast %7 : vector<1xf32> to vector<1x1x1xf32>
    %9 = vector.extract %8[0, 0, 0] : f32 from vector<1x1x1xf32>
    %cst_4 = arith.constant 5.000000e-03 : f32
    %10 = arith.mulf %9, %cst_4 : f32
    %c0_5 = arith.constant 0 : index
    %c0_6 = arith.constant 0 : index
    %11 = vector.load %arg2[%c0_5, %c0_6] : memref<1x20xf32, #tpu.memory_space<vmem>>, vector<1x20xf32>
    %12 = vector.shape_cast %11 : vector<1x20xf32> to vector<1x1x20xf32>
    %cst_7 = arith.constant dense<0.000000e+00> : vector<1xf32>
    %13 = vector.multi_reduction <add>, %12, %cst_7 [1, 2] : vector<1x1x20xf32> to vector<1xf32>
    %14 = vector.shape_cast %13 : vector<1xf32> to vector<1x1x1xf32>
    %15 = vector.extract %14[0, 0, 0] : f32 from vector<1x1x1xf32>
    %cst_8 = arith.constant 5.000000e-02 : f32
    %16 = arith.mulf %15, %cst_8 : f32
    %17 = arith.addf %4, %10 : f32
    %18 = arith.addf %17, %16 : f32
    %c0_9 = arith.constant 0 : index
    %c0_10 = arith.constant 0 : index
    %19 = memref.load %arg3[%c0_9, %c0_10] : memref<1x1xf32, #tpu.memory_space<smem>>
    memref.store %18, %arg3[%c0_9, %c0_10] : memref<1x1xf32, #tpu.memory_space<smem>>
    return
  }
}

</mosaic_0001>

<llo_original>
// kernel: tpu_custom_call.1
$region0: #{tpu_custom_call.1}
  #allocation0 [shape = 'u32[]', space=smem, size = 0x4, offset = 0x4, fixed_abs, tag = 'smem constant byte address 0x4 - core index']
  #allocation1 [shape = 'u32[144,128]{1,0:T(1,128)}', space=vmem, size = 0x12000, scoped, tag = 'internal scratch']
  %s0 = inlined_call_operand.vmem [shape: f32[16,128], index: 0, kind: input, shape index: {}]
  %s1 = inlined_call_operand.vmem [shape: f32[20,10], index: 1, kind: input, shape index: {}]
  %s2 = inlined_call_operand.vmem [shape: f32[1,20], index: 2, kind: input, shape index: {}]
  %s3 = inlined_call_operand.hbm [shape: f32[1,1], index: 3, kind: output, shape index: {}]
  %s4 = sld [smem:[#allocation0]]
  $region22: #{tpu_custom_call.1} parent=0
    _
  %s6 = ssub.s32 1, %s4
  %s7 = scalar_select 0, %s6, %s4
  $region1: #{tpu_custom_call.1} parent=0
    #allocation2 [shape = 'u8[512]{0}', space=smem, size = 0x200, scoped, tag = 'output window, operand 0, single buffered']
    #allocation3 [shape = 's32[1]{0}', space=sflag, size = 0x4, scoped, tag = 'scoped memory for tpu_custom_call.1']
    %8 = vsyncpa [#allocation3], 0
    // Predicated region
    $region2: #{tpu_custom_call.1} parent=1 // pred_check
      _
    $region3: #{tpu_custom_call.1} parent=1 // pred_check_branch
      %10 = sbr.rel (0) target = $region5
    $region4: #{tpu_custom_call.1} parent=1 // pred_region
      _
    $region5: #{tpu_custom_call.1} parent=1 // pred_fallthru
      _
    // Predicated region
    $region6: #{tpu_custom_call.1} parent=1 // pred_check
      _
    $region7: #{tpu_custom_call.1} parent=1 // pred_check_branch
      %12 = sbr.rel (0) target = $region9
    $region8: #{tpu_custom_call.1} parent=1 // pred_region
      _
    $region9: #{tpu_custom_call.1} parent=1 // pred_fallthru
      _
    // Predicated region
    $region10: #{tpu_custom_call.1} parent=1 // pred_check
      _
    $region11: #{tpu_custom_call.1} parent=1 // pred_check_branch
      %14 = sbr.rel (0) target = $region13
    $region12: #{tpu_custom_call.1} parent=1 // pred_region
      _
    $region13: #{tpu_custom_call.1} parent=1 // pred_fallthru
      _
    %v15 = vld [vmem:[%s0] sm:$0xff]
    %v16 = vld [vmem:[%s0 + $0x8] sm:$0xff]
    %v17 = vadd.f32 %v15, %v16
    %18 = vadd.xlane.f32.xlu0 %v17
    %v19 = vpop.xlane.xlu0 %18
    %v20 = vrot.slane %v19, 4
    %v21 = vadd.f32 %v19, %v20
    %v22 = vrot.slane %v21, 2
    %v23 = vadd.f32 %v21, %v22
    %v24 = vrot.slane %v23, 1
    %v25 = vadd.f32 %v23, %v24
    %s26 = vtos %v25
    %v27 = vld [vmem:[%s1] sm:$0xff]
    %v28 = vld [vmem:[%s1 + $0x8] sm:$0xff]
    %v29 = vld [vmem:[%s1 + $0x10] sm:$0xf]
    %vm30 = vcmask 80896
    %v31 = vsel %vm30, %v27, 0.0
    %v32 = vsel %vm30, %v28, 0.0
    %v33 = vadd.f32 %v31, %v32
    %vm34 = vcmask 76800
    %v35 = vsel %vm34, %v29, 0.0
    %v36 = vadd.f32 %v33, %v35
    %37 = vadd.xlane.f32.xlu0 %v36
    %v38 = vpop.xlane.xlu0 %37
    %v39 = vrot.slane %v38, 4
    %v40 = vadd.f32 %v38, %v39
    %v41 = vrot.slane %v40, 2
    %v42 = vadd.f32 %v40, %v41
    %v43 = vrot.slane %v42, 1
    %v44 = vadd.f32 %v42, %v43
    %s45 = vtos %v44
    %s46 = smul.f32 %s45, 0.005
    %v47 = vld [vmem:[%s2] sm:$0x1]
    %vm48 = vcmask 155648
    %v49 = vsel %vm48, %v47, 0.0
    %50 = vadd.xlane.f32.xlu0 %v49
    %v51 = vpop.xlane.xlu0 %50
    %v52 = vrot.slane %v51, 4
    %v53 = vadd.f32 %v51, %v52
    %v54 = vrot.slane %v53, 2
    %v55 = vadd.f32 %v53, %v54
    %v56 = vrot.slane %v55, 1
    %v57 = vadd.f32 %v55, %v56
    %s58 = vtos %v57
    %s59 = smul.f32 %s58, 0.05
    %s60 = sadd.f32 %s26, %s46
    %s61 = sadd.f32 %s60, %s59
    %s62 = scalar_lea.smem [#allocation2], 0
    %63 = sst [smem:[%s62]] %s61
    // Predicated region
    $region14: #{tpu_custom_call.1} parent=1 // pred_check
      _
    $region15: #{tpu_custom_call.1} parent=1 // pred_check_branch
      %65 = sbr.rel (0) target = $region17
    $region16: #{tpu_custom_call.1} parent=1 // pred_region
      %s67 = ssub.s32 16, 16
      %68 = vsyncadd [#allocation3], %s67
      %71 = dma.smem_to_hbm [#allocation2], 16, %s3, [#allocation3]
    $region17: #{tpu_custom_call.1} parent=1 // pred_fallthru
      _
    // Predicated region
    $region18: #{tpu_custom_call.1} parent=1 // pred_check
      _
    $region19: #{tpu_custom_call.1} parent=1 // pred_check_branch
      %73 = sbr.rel (0) target = $region21
    $region20: #{tpu_custom_call.1} parent=1 // pred_region
      %74 = dma.done [#allocation3], 16
    $region21: #{tpu_custom_call.1} parent=1 // pred_fallthru
      _
    %75 = sfence
    %76 = vsyncpa [#allocation3], 1

</llo_original>
